<compile_context>
chip_gen: v6e
topology: v6e:2x2x1
jax: 0.10.0
libtpu: 0.0.40
codegen_flags: <defaults>
</compile_context>

<pallas_src>
import jax
import jax.numpy as jnp
from jax.experimental import pallas as pl
from jax.experimental.pallas import tpu as pltpu


def _embedding_identity_kernel(emb_ref, out_ref):
    # Straight-line identity: the (1, 3) f32 tile fits in a fraction of one vreg.
    out_ref[...] = emb_ref[...]


@jax.jit
def materialize_embedding(embedding: jax.Array) -> jax.Array:
    """Identity-materialize the embedding parameter through a Pallas kernel.

    Grid-free, whole-array VMEM specs, NO input/output aliasing (per review:
    aliasing under jit without donation just inserts a defensive copy).
    Not called by embedding_module_forward — the reference forward is a no-op.
    """
    return pl.pallas_call(
        _embedding_identity_kernel,
        out_shape=jax.ShapeDtypeStruct(embedding.shape, embedding.dtype),
        in_specs=[pl.BlockSpec(memory_space=pltpu.MemorySpace.VMEM)],
        out_specs=pl.BlockSpec(memory_space=pltpu.MemorySpace.VMEM),
    )(embedding)


def embedding_module_forward(embedding: jax.Array):
    """
    Mirrors EmbeddingModule.forward(): an explicit no-op returning None.
    Per the performance review, no kernel is dispatched and no host-device
    sync happens here — the forward pass costs nothing.
    """
    del embedding
    return None


if __name__ == "__main__":
    key = jax.random.PRNGKey(0)
    # Deterministic init matching nn.Parameter(torch.randn(1, 3)) shape/dtype.
    embedding = jax.random.normal(key, (1, 3), dtype=jnp.float32)

    # forward() semantics: no-op, returns None, zero device work.
    result = embedding_module_forward(embedding)
    assert result is None

    # Exercise the Pallas kernel once outside the forward hot path; the caller
    # (not the wrapper) is responsible for synchronization.
    out = materialize_embedding(embedding)
    jax.block_until_ready(out)
    assert out.shape == (1, 3) and out.dtype == jnp.float32
    assert bool(jnp.allclose(out, embedding))

    print("KERNEL_OK")
</pallas_src>

<mosaic_0001>
module attributes {stable_mosaic.version = 11 : i64} {
  func.func @_embedding_identity_kernel(%arg0: memref<1x3xf32, #tpu.memory_space<vmem>>, %arg1: memref<1x3xf32, #tpu.memory_space<vmem>>) attributes {dimension_semantics = [], scalar_prefetch = 0 : i64, scratch_operands = 0 : i64, tpu.core_type = #tpu.core_type<tc>} {
    %c0 = arith.constant 0 : index
    %c0_0 = arith.constant 0 : index
    %0 = vector.load %arg0[%c0, %c0_0] : memref<1x3xf32, #tpu.memory_space<vmem>>, vector<1x3xf32>
    %c0_1 = arith.constant 0 : index
    %c0_2 = arith.constant 0 : index
    %1 = vector.load %arg1[%c0_1, %c0_2] : memref<1x3xf32, #tpu.memory_space<vmem>>, vector<1x3xf32>
    tpu.vector_store %arg1[%c0_1, %c0_2], %0 {strides = array<i32>} : memref<1x3xf32, #tpu.memory_space<vmem>>, vector<1x3xf32>,
    return
  }
}

</mosaic_0001>

<llo_original>
// kernel: materialize_embedding.1
$region0: #{materialize_embedding.1}
  #allocation0 [shape = 'u32[]', space=smem, size = 0x4, offset = 0x4, fixed_abs, tag = 'smem constant byte address 0x4 - core index']
  #allocation1 [shape = 'u32[144,128]{1,0:T(1,128)}', space=vmem, size = 0x12000, scoped, tag = 'internal scratch']
  %s0 = inlined_call_operand.hbm [shape: f32[1,3], index: 0, kind: input, shape index: {}]
  %s1 = inlined_call_operand.hbm [shape: f32[1,3], index: 1, kind: output, shape index: {}]
  %s2 = sld [smem:[#allocation0]]
  $region18: #{materialize_embedding.1} parent=0
    _
  %s4 = ssub.s32 1, %s2
  %s5 = scalar_select 0, %s4, %s2
  $region1: #{materialize_embedding.1} parent=0
    #allocation2 [shape = 'u8[512]{0}', space=vmem, size = 0x400, scoped, tag = 'input window, operand 0, single buffered']
    #allocation3 [shape = 's32[1]{0}', space=sflag, size = 0x4, scoped, tag = 'scoped memory for materialize_embedding.1']
    #allocation4 [shape = 's32[1]{0}', space=sflag, size = 0x4, scoped, tag = 'scoped memory for materialize_embedding.1']
    #allocation5 [shape = 'u8[512]{0}', space=vmem, size = 0x400, scoped, tag = 'output window, operand 0, single buffered']
    %6 = vsyncpa [#allocation3], 0
    %7 = vsyncpa [#allocation4], 0
    // Predicated region
    $region2: #{materialize_embedding.1} parent=1 // pred_check
      _
    $region3: #{materialize_embedding.1} parent=1 // pred_check_branch
      %9 = sbr.rel (0) target = $region5
    $region4: #{materialize_embedding.1} parent=1 // pred_region
      %s11 = ssub.s32 16, 16
      %12 = vsyncadd [#allocation3], %s11
      %s14 = sshll.u32 [#allocation2], 4
      %s15 = int_to_ptr.vmem [resolvable:$true] %s14
      %17 = dma.hbm_to_vmem [thread:$0]  %s0, 16, %s15, [#allocation3]
    $region5: #{materialize_embedding.1} parent=1 // pred_fallthru
      _
    // Predicated region
    $region6: #{materialize_embedding.1} parent=1 // pred_check
      _
    $region7: #{materialize_embedding.1} parent=1 // pred_check_branch
      %19 = sbr.rel (0) target = $region9
    $region8: #{materialize_embedding.1} parent=1 // pred_region
      %20 = dma.done [#allocation3], 16
    $region9: #{materialize_embedding.1} parent=1 // pred_fallthru
      _
    %v21 = vld [vmem:[#allocation2] sm:$0x1]
    %vm22 = vcmask 16384
    %23 = vst.msk [vmem:[#allocation5] sm:$0x1] %vm22, %v21
    // Predicated region
    $region10: #{materialize_embedding.1} parent=1 // pred_check
      _
    $region11: #{materialize_embedding.1} parent=1 // pred_check_branch
      %25 = sbr.rel (0) target = $region13
    $region12: #{materialize_embedding.1} parent=1 // pred_region
      %s27 = ssub.s32 16, 16
      %28 = vsyncadd [#allocation4], %s27
      %s30 = sshll.u32 [#allocation5], 4
      %s31 = int_to_ptr.vmem [resolvable:$true] %s30
      %33 = dma.vmem_to_hbm [thread:$0]  %s31, 16, %s1, [#allocation4]
    $region13: #{materialize_embedding.1} parent=1 // pred_fallthru
      _
    // Predicated region
    $region14: #{materialize_embedding.1} parent=1 // pred_check
      _
    $region15: #{materialize_embedding.1} parent=1 // pred_check_branch
      %35 = sbr.rel (0) target = $region17
    $region16: #{materialize_embedding.1} parent=1 // pred_region
      %36 = dma.done [#allocation4], 16
    $region17: #{materialize_embedding.1} parent=1 // pred_fallthru
      _
    %37 = vsyncpa [#allocation3], 1
    %38 = vsyncpa [#allocation4], 1

</llo_original>
